<compile_context>
chip_gen: v7x
topology: tpu7x:2x2x1
jax: 0.10.0
libtpu: 0.0.40
codegen_flags: <defaults>
</compile_context>

<pallas_src>
import numpy as np
import jax
import jax.numpy as jnp
from jax.experimental import pallas as pl
from jax.experimental.pallas import tpu as pltpu


# ----------------------------------------------------------------------------
# Pallas kernel: identity copy of one (tile_m, C) block
# ----------------------------------------------------------------------------
def _copy_kernel(x_ref, o_ref):
    o_ref[...] = x_ref[...]


def _pick_row_tile(M, C, itemsize, vmem_budget_bytes=8 * 1024 * 1024):
    """Largest sublane-friendly row tile that divides M and fits VMEM.

    Budget accounts for double-buffered input + output (~4x one tile).  Falls
    back to the full array, which is always a legal block shape.
    """
    max_rows = max(8, vmem_budget_bytes // max(1, 4 * C * itemsize))
    for cand in (1024, 512, 256, 128, 64, 32, 16, 8):
        if cand <= max_rows and M % cand == 0:
            return cand
    return M  # block == full array dims (always legal w.r.t. the (8,128) rule)


def identity_copy(x):
    """Pallas identity copy of an arbitrary-shaped array (last dim -> lanes)."""
    orig_shape = x.shape
    C = orig_shape[-1] if x.ndim >= 1 else 1
    M = int(np.prod(orig_shape[:-1])) if x.ndim >= 2 else 1
    x2 = x.reshape(M, C)                      # row-major reshape: free in XLA

    tile_m = _pick_row_tile(M, C, x2.dtype.itemsize)
    grid = (M // tile_m,)

    out = pl.pallas_call(
        _copy_kernel,
        out_shape=jax.ShapeDtypeStruct((M, C), x2.dtype),
        grid=grid,
        in_specs=[pl.BlockSpec((tile_m, C), lambda i: (i, 0))],
        out_specs=pl.BlockSpec((tile_m, C), lambda i: (i, 0)),
        compiler_params=pltpu.CompilerParams(
            dimension_semantics=("parallel",)),   # lets v7x split rows over 2 TCs
    )(x2)

    return out.reshape(orig_shape)


# ----------------------------------------------------------------------------
# Module-equivalent wrapper
# ----------------------------------------------------------------------------
class IdentityTargetPallas:
    """JAX/Pallas port of IdentityTarget.forward (no parameters)."""

    def __init__(self, key_in="targets", key_out="targets"):
        self.key_in = key_in
        self.key_out = key_out
        self.requires_model = False

    def __call__(self, x):
        xin = x[self.key_in]
        if xin.ndim == 2:
            xin = jnp.expand_dims(xin, 0)     # torch `unsqueeze(0)` (metadata only)
        x[self.key_out] = identity_copy(xin)  # identity pass-through on device
        return x


if __name__ == "__main__":
    key = jax.random.PRNGKey(0)
    k2, k3, k4 = jax.random.split(key, 3)

    module = IdentityTargetPallas()

    # ndim == 2 path: gains a leading batch dim (unsqueeze(0))
    t2 = jax.random.normal(k2, (8, 32), jnp.float32)
    out2 = module({"targets": t2})
    y2 = jax.block_until_ready(out2["targets"])
    assert y2.shape == (1, 8, 32), y2.shape
    assert bool(jnp.all(y2[0] == t2)), "2D path: values differ"

    # ndim == 3 path: passed through unchanged
    t3 = jax.random.normal(k3, (2, 8, 32), jnp.float32)
    out3 = module({"targets": t3})
    y3 = jax.block_until_ready(out3["targets"])
    assert y3.shape == (2, 8, 32), y3.shape
    assert bool(jnp.all(y3 == t3)), "3D path: values differ"

    # lane-dense case (last dim = 128) exercising the tiled grid path
    t4 = jax.random.normal(k4, (2, 64, 128), jnp.float32)
    out4 = module({"targets": t4})
    y4 = jax.block_until_ready(out4["targets"])
    assert y4.shape == (2, 64, 128), y4.shape
    assert bool(jnp.all(y4 == t4)), "tiled path: values differ"

    print("KERNEL_OK")
</pallas_src>

<mosaic_0001>
module attributes {stable_mosaic.version = 11 : i64} {
  func.func @_copy_kernel(%arg0: i32, %arg1: memref<8x32xf32, #tpu.memory_space<vmem>>, %arg2: memref<8x32xf32, #tpu.memory_space<vmem>>) attributes {dimension_semantics = [#tpu.dimension_semantics<parallel>], iteration_bounds = array<i64: 1>, scalar_prefetch = 0 : i64, scratch_operands = 0 : i64, tpu.core_type = #tpu.core_type<tc>, window_params = [{transform_indices = @transform_0, window_bounds = array<i64: 8, 32>}, {transform_indices = @transform_1, window_bounds = array<i64: 8, 32>}]} {
    %c0 = arith.constant 0 : index
    %c0_0 = arith.constant 0 : index
    %0 = vector.load %arg1[%c0, %c0_0] : memref<8x32xf32, #tpu.memory_space<vmem>>, vector<8x32xf32>
    %c0_1 = arith.constant 0 : index
    %c0_2 = arith.constant 0 : index
    %1 = vector.load %arg2[%c0_1, %c0_2] : memref<8x32xf32, #tpu.memory_space<vmem>>, vector<8x32xf32>
    tpu.vector_store %arg2[%c0_1, %c0_2], %0 {strides = array<i32>} : memref<8x32xf32, #tpu.memory_space<vmem>>, vector<8x32xf32>,
    return
  }
  func.func @transform_0(%arg0: i32) -> (i32, i32) {
    %c0_i32 = arith.constant 0 : i32
    %c0_i32_0 = arith.constant 0 : i32
    return %arg0, %c0_i32 : i32, i32
  }
  func.func @transform_1(%arg0: i32) -> (i32, i32) {
    %c0_i32 = arith.constant 0 : i32
    %c0_i32_0 = arith.constant 0 : i32
    return %arg0, %c0_i32 : i32, i32
  }
}

</mosaic_0001>

<llo_original>
// kernel: tpu_custom_call.1
$region0: #{tpu_custom_call.1}
  #allocation0 [shape = 'u32[]', space=smem, size = 0x4, offset = 0x4, fixed_abs, tag = 'smem constant byte address 0x4 - core index']
  #allocation1 [shape = 'u32[144,128]{1,0:T(1,128)}', space=vmem, size = 0x12000, scoped, tag = 'internal scratch']
  %s0 = inlined_call_operand.hbm [shape: f32[8,32], index: 0, kind: input, shape index: {}]
  %s1 = inlined_call_operand.hbm [shape: f32[8,32], index: 1, kind: output, shape index: {}]
  %s2 = sld [smem:[#allocation0]]
  $region18: #{tpu_custom_call.1} parent=0
    _
  %s4 = ssub.s32 1, %s2
  %s5 = scalar_select 0, %s4, %s2
  $region1: #{tpu_custom_call.1} parent=0
    #allocation2 [shape = 'u8[4096]{0}', space=vmem, size = 0x1000, scoped, tag = 'input window, operand 0, single buffered']
    #allocation3 [shape = 's32[1]{0}', space=sflag, size = 0x4, scoped, tag = 'scoped memory for tpu_custom_call.1']
    #allocation4 [shape = 's32[1]{0}', space=sflag, size = 0x4, scoped, tag = 'scoped memory for tpu_custom_call.1']
    #allocation5 [shape = 'u8[4096]{0}', space=vmem, size = 0x1000, scoped, tag = 'output window, operand 0, single buffered']
    %6 = vsyncpa [#allocation3], 0
    %7 = vsyncpa [#allocation4], 0
    // Predicated region
    $region2: #{tpu_custom_call.1} parent=1 // pred_check
      _
    $region3: #{tpu_custom_call.1} parent=1 // pred_check_branch
      %9 = sbr.rel (0) target = $region5
    $region4: #{tpu_custom_call.1} parent=1 // pred_region
      %s11 = ssub.s32 128, 128
      %12 = vsyncadd [#allocation3], %s11
      %s14 = sshll.u32 [#allocation2], 4
      %s15 = int_to_ptr.vmem [resolvable:$true] %s14
      %17 = dma.hbm_to_vmem [thread:$0]  %s0, 128, %s15, [#allocation3]
    $region5: #{tpu_custom_call.1} parent=1 // pred_fallthru
      _
    // Predicated region
    $region6: #{tpu_custom_call.1} parent=1 // pred_check
      _
    $region7: #{tpu_custom_call.1} parent=1 // pred_check_branch
      %19 = sbr.rel (0) target = $region9
    $region8: #{tpu_custom_call.1} parent=1 // pred_region
      %20 = dma.done [#allocation3], 128
    $region9: #{tpu_custom_call.1} parent=1 // pred_fallthru
      _
    %v21 = vld [vmem:[#allocation2] sm:$0xff]
    %vm22 = vcmask 261120
    %23 = vst.msk [vmem:[#allocation5] sm:$0xff] %vm22, %v21
    // Predicated region
    $region10: #{tpu_custom_call.1} parent=1 // pred_check
      _
    $region11: #{tpu_custom_call.1} parent=1 // pred_check_branch
      %25 = sbr.rel (0) target = $region13
    $region12: #{tpu_custom_call.1} parent=1 // pred_region
      %s27 = ssub.s32 128, 128
      %28 = vsyncadd [#allocation4], %s27
      %s30 = sshll.u32 [#allocation5], 4
      %s31 = int_to_ptr.vmem [resolvable:$true] %s30
      %33 = dma.vmem_to_hbm [thread:$0]  %s31, 128, %s1, [#allocation4]
    $region13: #{tpu_custom_call.1} parent=1 // pred_fallthru
      _
    // Predicated region
    $region14: #{tpu_custom_call.1} parent=1 // pred_check
      _
    $region15: #{tpu_custom_call.1} parent=1 // pred_check_branch
      %35 = sbr.rel (0) target = $region17
    $region16: #{tpu_custom_call.1} parent=1 // pred_region
      %36 = dma.done [#allocation4], 128
    $region17: #{tpu_custom_call.1} parent=1 // pred_fallthru
      _
    %37 = vsyncpa [#allocation3], 1
    %38 = vsyncpa [#allocation4], 1

</llo_original>
